<compile_context>
chip_gen: v6e
topology: v6e:2x2x1
jax: 0.10.0
libtpu: 0.0.40
codegen_flags: <defaults>
</compile_context>

<pallas_src>
import functools

import jax
import jax.numpy as jnp
import numpy as np
from jax import lax
from jax.experimental import pallas as pl
from jax.experimental.pallas import tpu as pltpu


# ------------------------- configuration (small, deterministic) -------------
N = 2            # batch
PLANES = 4       # bottleneck width
EXPANSION = 4
INPLANES = PLANES * EXPANSION   # = 16, so residual add works (downsample=None)
L = 16           # sequence length
DILATION = 1     # conv2 dilation (== its padding)
EPS = 1e-5


# ------------------------------- Pallas kernel -------------------------------
def _bottleneck_kernel(x_ref, w1_ref, w2_ref, w3_ref, b_ref, out_ref, *,
                       dilation, seq_len):
    nl, cin = x_ref.shape
    planes = w1_ref.shape[1]
    d = dilation

    x = x_ref[...]                                   # (NL, Cin) f32 (kept for residual)

    b_all = b_ref[...]                               # (3, Cout) f32
    b1 = b_all[0:1, :planes]
    b2 = b_all[1:2, :planes]
    b3 = b_all[2:3, :]

    # ---- conv1: 1x1 conv (BN scale folded into weights) + bias + ReLU ----
    h1 = jnp.maximum(
        jnp.dot(x.astype(jnp.bfloat16), w1_ref[...],
                preferred_element_type=jnp.float32) + b1, 0.0)       # (NL, P) f32

    # ---- conv2: k=3, dilation=d, 'same' padding ----
    # Three tap matmuls (prev / center / next) accumulated in f32.  The shifted taps
    # are built with pltpu.roll (XLU slot); rows whose shifted tap would cross a
    # sequence boundary are zeroed AFTER the dot, with a single (NL, 1) predicate.
    pos = lax.broadcasted_iota(jnp.int32, (nl, 1), 0) % seq_len      # position in seq
    h1_b = h1.astype(jnp.bfloat16)
    h1_prev = pltpu.roll(h1, shift=d, axis=0).astype(jnp.bfloat16)       # row r <- r-d
    h1_next = pltpu.roll(h1, shift=nl - d, axis=0).astype(jnp.bfloat16)  # row r <- r+d

    acc = jnp.dot(h1_b, w2_ref[1], preferred_element_type=jnp.float32)
    acc = acc + jnp.where(
        pos >= d,
        jnp.dot(h1_prev, w2_ref[0], preferred_element_type=jnp.float32), 0.0)
    acc = acc + jnp.where(
        pos < seq_len - d,
        jnp.dot(h1_next, w2_ref[2], preferred_element_type=jnp.float32), 0.0)
    h2 = jnp.maximum(acc + b2, 0.0)                                   # (NL, P) f32

    # ---- conv3: 1x1 conv (BN scale folded) + bias, residual add, final ReLU ----
    h3 = jnp.dot(h2.astype(jnp.bfloat16), w3_ref[...],
                 preferred_element_type=jnp.float32) + b3             # (NL, Cout) f32
    out_ref[...] = jnp.maximum(h3 + x, 0.0)


def bottleneck_pallas(x_nlc, w1f, w2f, w3f, biases, *, dilation=DILATION):
    """x_nlc: (N, L, Cin) f32.  Returns (N, L, Cout) f32 with Cout == Cin.

    w1f:    (Cin, P)     bf16 -- BN1 scale folded in
    w2f:    (3, P, P)    bf16 -- tap t in {x[l-d], x[l], x[l+d]}, BN2 scale folded in
    w3f:    (P, Cout)    bf16 -- BN3 scale folded in
    biases: (3, Cout)    f32  -- rows = [b1 (padded), b2 (padded), b3]
    """
    n, length, cin = x_nlc.shape
    planes = w1f.shape[1]
    cout = w3f.shape[1]
    nl = n * length

    # Layout plumbing stays in the wrapper (free); kernel sees 2-D (NL, C) slabs.
    x_2d = x_nlc.reshape(nl, cin)

    kernel = functools.partial(_bottleneck_kernel, dilation=dilation, seq_len=length)
    full = lambda shape: pl.BlockSpec(shape, lambda i, _s=shape: (0,) * len(_s))

    out_2d = pl.pallas_call(
        kernel,
        out_shape=jax.ShapeDtypeStruct((nl, cout), jnp.float32),
        grid_spec=pl.GridSpec(
            grid=(1,),                                   # single step: whole batch
            in_specs=[
                full((nl, cin)),                         # x  (NL, Cin)
                full((cin, planes)),                     # w1f
                full((3, planes, planes)),               # w2f (per-tap slabs)
                full((planes, cout)),                    # w3f
                full((3, cout)),                         # packed biases
            ],
            out_specs=full((nl, cout)),
        ),
        compiler_params=pltpu.CompilerParams(dimension_semantics=("parallel",)),
    )(x_2d, w1f, w2f, w3f, biases)
    return out_2d.reshape(n, length, cout)


# ------------------------------- reference (pure JAX, f32) -------------------
def _conv1d_nclayout(x_ncl, w_oik, padding, dilation):
    return lax.conv_general_dilated(
        x_ncl, w_oik, window_strides=(1,), padding=[(padding, padding)],
        rhs_dilation=(dilation,), dimension_numbers=("NCH", "OIH", "NCH"))


def bottleneck_ref(x_ncl, params):
    (w1, w2, w3, s1, b1, s2, b2, s3, b3) = params
    bn = lambda y, s, b: y * s[None, :, None] + b[None, :, None]
    h = jax.nn.relu(bn(_conv1d_nclayout(x_ncl, w1, 0, 1), s1, b1))
    h = jax.nn.relu(bn(_conv1d_nclayout(h, w2, DILATION, DILATION), s2, b2))
    h = bn(_conv1d_nclayout(h, w3, 0, 1), s3, b3)
    return jax.nn.relu(h + x_ncl)


# ------------------------------------ main -----------------------------------
if __name__ == "__main__":
    key = jax.random.PRNGKey(0)
    ks = jax.random.split(key, 12)

    # Input: PyTorch layout (N, C, L)
    x_ncl = jax.random.normal(ks[0], (N, INPLANES, L), dtype=jnp.float32)

    # Conv weights (PyTorch (C_out, C_in, K) shapes), deterministic init.
    w1 = jax.random.normal(ks[1], (PLANES, INPLANES, 1), jnp.float32) * 0.1
    w2 = jax.random.normal(ks[2], (PLANES, PLANES, 3), jnp.float32) * 0.1
    w3 = jax.random.normal(ks[3], (INPLANES, PLANES, 1), jnp.float32) * 0.1

    # BatchNorm parameters / running stats, deterministic (eval-mode fold).
    def bn_params(kg, kb, km, kv, c):
        gamma = 1.0 + 0.1 * jax.random.normal(kg, (c,), jnp.float32)
        beta = 0.1 * jax.random.normal(kb, (c,), jnp.float32)
        mean = 0.1 * jax.random.normal(km, (c,), jnp.float32)
        var = jnp.abs(jax.random.normal(kv, (c,), jnp.float32)) + 0.5
        scale = gamma / jnp.sqrt(var + EPS)
        bias = beta - mean * scale
        return scale, bias

    s1, b1 = bn_params(ks[4], ks[5], ks[6], ks[7], PLANES)
    s2, b2 = bn_params(ks[8], ks[9], ks[10], ks[11], PLANES)
    k2 = jax.random.split(jax.random.PRNGKey(1), 4)
    s3, b3 = bn_params(k2[0], k2[1], k2[2], k2[3], INPLANES)

    # ---- kernel-ready params: NLC layout, BN scales folded, bf16 MXU operands ----
    x_nlc = jnp.transpose(x_ncl, (0, 2, 1))                                 # (N, L, Cin)
    w1f = (jnp.transpose(w1[:, :, 0], (1, 0)) * s1[None, :]).astype(jnp.bfloat16)
    w2f = jnp.stack(
        [w2[:, :, t].T * s2[None, :] for t in range(3)], axis=0
    ).astype(jnp.bfloat16)                                                  # (3, P, P)
    w3f = (jnp.transpose(w3[:, :, 0], (1, 0)) * s3[None, :]).astype(jnp.bfloat16)

    biases = jnp.zeros((3, INPLANES), jnp.float32)
    biases = (biases.at[0, :PLANES].set(b1)
                    .at[1, :PLANES].set(b2)
                    .at[2, :].set(b3))

    out_nlc = bottleneck_pallas(x_nlc, w1f, w2f, w3f, biases)
    out_nlc = jax.block_until_ready(out_nlc)
    out_ncl = jnp.transpose(out_nlc, (0, 2, 1))

    ref = bottleneck_ref(x_ncl, (w1, w2, w3, s1, b1, s2, b2, s3, b3))
    # bf16 MXU operands (BN-folded weights + activations) vs. pure-f32 reference:
    # tolerance loosened per review; bias/ReLU/residual stay f32 to bound the error.
    np.testing.assert_allclose(np.asarray(out_ncl), np.asarray(ref),
                               rtol=2e-2, atol=5e-2)
    print("KERNEL_OK")
</pallas_src>

<mosaic_0001>
module attributes {stable_mosaic.version = 11 : i64} {
  func.func @_bottleneck_kernel(%arg0: i32, %arg1: memref<32x16xf32, #tpu.memory_space<vmem>>, %arg2: memref<16x4xbf16, #tpu.memory_space<vmem>>, %arg3: memref<3x4x4xbf16, #tpu.memory_space<vmem>>, %arg4: memref<4x16xbf16, #tpu.memory_space<vmem>>, %arg5: memref<3x16xf32, #tpu.memory_space<vmem>>, %arg6: memref<32x16xf32, #tpu.memory_space<vmem>>) attributes {dimension_semantics = [#tpu.dimension_semantics<parallel>], iteration_bounds = array<i64: 1>, scalar_prefetch = 0 : i64, scratch_operands = 0 : i64, tpu.core_type = #tpu.core_type<tc>, window_params = [{pipeline_mode = #tpu.pipeline_mode<synchronous>, transform_indices = @transform_0, window_bounds = array<i64: 32, 16>}, {pipeline_mode = #tpu.pipeline_mode<synchronous>, transform_indices = @transform_1, window_bounds = array<i64: 16, 4>}, {pipeline_mode = #tpu.pipeline_mode<synchronous>, transform_indices = @transform_2, window_bounds = array<i64: 3, 4, 4>}, {pipeline_mode = #tpu.pipeline_mode<synchronous>, transform_indices = @transform_3, window_bounds = array<i64: 4, 16>}, {pipeline_mode = #tpu.pipeline_mode<synchronous>, transform_indices = @transform_4, window_bounds = array<i64: 3, 16>}, {pipeline_mode = #tpu.pipeline_mode<synchronous>, transform_indices = @transform_5, window_bounds = array<i64: 32, 16>}]} {
    %c0 = arith.constant 0 : index
    %c0_0 = arith.constant 0 : index
    %0 = vector.load %arg1[%c0, %c0_0] : memref<32x16xf32, #tpu.memory_space<vmem>>, vector<32x16xf32>
    %c0_1 = arith.constant 0 : index
    %c0_2 = arith.constant 0 : index
    %1 = vector.load %arg5[%c0_1, %c0_2] : memref<3x16xf32, #tpu.memory_space<vmem>>, vector<3x16xf32>
    %2 = vector.extract_strided_slice %1 {offsets = [0, 0], sizes = [1, 4], strides = [1, 1]} : vector<3x16xf32> to vector<1x4xf32>
    %3 = vector.extract_strided_slice %1 {offsets = [1, 0], sizes = [1, 4], strides = [1, 1]} : vector<3x16xf32> to vector<1x4xf32>
    %4 = vector.extract_strided_slice %1 {offsets = [2, 0], sizes = [1, 16], strides = [1, 1]} : vector<3x16xf32> to vector<1x16xf32>
    %5 = arith.truncf %0 : vector<32x16xf32> to vector<32x16xbf16>
    %c0_3 = arith.constant 0 : index
    %c0_4 = arith.constant 0 : index
    %6 = vector.load %arg2[%c0_3, %c0_4] : memref<16x4xbf16, #tpu.memory_space<vmem>>, vector<16x4xbf16>
    %cst = arith.constant dense<0.000000e+00> : vector<32x4xf32>
    %7 = tpu.matmul %5, %6, %cst {dimension_numbers = #tpu.dot_dimension_numbers<[1], [0], [0], [1], [0, 0, 1, 1], [], []>} : vector<32x16xbf16>, vector<16x4xbf16>, vector<32x4xf32> -> vector<32x4xf32>
    %8 = vector.broadcast %2 : vector<1x4xf32> to vector<32x4xf32>
    %9 = arith.addf %7, %8 : vector<32x4xf32>
    %cst_5 = arith.constant 0.000000e+00 : f32
    %10 = vector.broadcast %cst_5 : f32 to vector<32x4xf32>
    %11 = arith.maximumf %9, %10 : vector<32x4xf32>
    %12 = tpu.iota {dimensions = array<i32: 0>} : vector<32x1xi32>
    %c16_i32 = arith.constant 16 : i32
    %c0_i32 = arith.constant 0 : i32
    %13 = arith.cmpi eq, %c16_i32, %c0_i32 : i32
    %c1_i32 = arith.constant 1 : i32
    %14 = arith.select %13, %c1_i32, %c16_i32 : i32
    %15 = vector.broadcast %14 : i32 to vector<32x1xi32>
    %16 = arith.remsi %12, %15 : vector<32x1xi32>
    %c0_i32_6 = arith.constant 0 : i32
    %17 = vector.broadcast %c0_i32_6 : i32 to vector<32x1xi32>
    %18 = arith.cmpi ne, %16, %17 : vector<32x1xi32>
    %c0_i32_7 = arith.constant 0 : i32
    %19 = vector.broadcast %c0_i32_7 : i32 to vector<32x1xi32>
    %20 = arith.cmpi slt, %16, %19 : vector<32x1xi32>
    %c0_i32_8 = arith.constant 0 : i32
    %21 = arith.cmpi slt, %14, %c0_i32_8 : i32
    %22 = vector.broadcast %21 : i1 to vector<32x1xi1>
    %23 = vector.broadcast %22 : vector<32x1xi1> to vector<32x1xi1>
    %24 = arith.xori %20, %23 : vector<32x1xi1>
    %25 = arith.andi %24, %18 : vector<32x1xi1>
    %26 = vector.broadcast %14 : i32 to vector<32x1xi32>
    %27 = arith.addi %16, %26 : vector<32x1xi32>
    %28 = arith.select %25, %27, %16 : vector<32x1xi1>, vector<32x1xi32>
    %29 = arith.truncf %11 : vector<32x4xf32> to vector<32x4xbf16>
    %c1_i32_9 = arith.constant 1 : i32
    %30 = tpu.dynamic_rotate %11 by %c1_i32_9 dim 0 : vector<32x4xf32>, i32 -> vector<32x4xf32>
    %31 = arith.truncf %30 : vector<32x4xf32> to vector<32x4xbf16>
    %c31_i32 = arith.constant 31 : i32
    %32 = tpu.dynamic_rotate %11 by %c31_i32 dim 0 : vector<32x4xf32>, i32 -> vector<32x4xf32>
    %33 = arith.truncf %32 : vector<32x4xf32> to vector<32x4xbf16>
    %c1 = arith.constant 1 : index
    %c0_10 = arith.constant 0 : index
    %c0_11 = arith.constant 0 : index
    %34 = vector.load %arg3[%c1, %c0_10, %c0_11] : memref<3x4x4xbf16, #tpu.memory_space<vmem>>, vector<1x4x4xbf16>
    %35 = vector.shape_cast %34 : vector<1x4x4xbf16> to vector<4x4xbf16>
    %cst_12 = arith.constant dense<0.000000e+00> : vector<32x4xf32>
    %36 = tpu.matmul %29, %35, %cst_12 {dimension_numbers = #tpu.dot_dimension_numbers<[1], [0], [0], [1], [0, 0, 1, 1], [], []>} : vector<32x4xbf16>, vector<4x4xbf16>, vector<32x4xf32> -> vector<32x4xf32>
    %c1_i32_13 = arith.constant 1 : i32
    %37 = vector.broadcast %c1_i32_13 : i32 to vector<32x1xi32>
    %38 = arith.cmpi sge, %28, %37 : vector<32x1xi32>
    %c0_14 = arith.constant 0 : index
    %c0_15 = arith.constant 0 : index
    %c0_16 = arith.constant 0 : index
    %39 = vector.load %arg3[%c0_14, %c0_15, %c0_16] : memref<3x4x4xbf16, #tpu.memory_space<vmem>>, vector<1x4x4xbf16>
    %40 = vector.shape_cast %39 : vector<1x4x4xbf16> to vector<4x4xbf16>
    %cst_17 = arith.constant dense<0.000000e+00> : vector<32x4xf32>
    %41 = tpu.matmul %31, %40, %cst_17 {dimension_numbers = #tpu.dot_dimension_numbers<[1], [0], [0], [1], [0, 0, 1, 1], [], []>} : vector<32x4xbf16>, vector<4x4xbf16>, vector<32x4xf32> -> vector<32x4xf32>
    %cst_18 = arith.constant 0.000000e+00 : f32
    %42 = vector.shape_cast %38 : vector<32x1xi1> to vector<32x1xi1>
    %43 = vector.broadcast %42 : vector<32x1xi1> to vector<32x4xi1>
    %44 = vector.broadcast %cst_18 : f32 to vector<32x4xf32>
    %45 = arith.select %43, %41, %44 : vector<32x4xi1>, vector<32x4xf32>
    %46 = arith.addf %36, %45 : vector<32x4xf32>
    %c15_i32 = arith.constant 15 : i32
    %47 = vector.broadcast %c15_i32 : i32 to vector<32x1xi32>
    %48 = arith.cmpi slt, %28, %47 : vector<32x1xi32>
    %c2 = arith.constant 2 : index
    %c0_19 = arith.constant 0 : index
    %c0_20 = arith.constant 0 : index
    %49 = vector.load %arg3[%c2, %c0_19, %c0_20] : memref<3x4x4xbf16, #tpu.memory_space<vmem>>, vector<1x4x4xbf16>
    %50 = vector.shape_cast %49 : vector<1x4x4xbf16> to vector<4x4xbf16>
    %cst_21 = arith.constant dense<0.000000e+00> : vector<32x4xf32>
    %51 = tpu.matmul %33, %50, %cst_21 {dimension_numbers = #tpu.dot_dimension_numbers<[1], [0], [0], [1], [0, 0, 1, 1], [], []>} : vector<32x4xbf16>, vector<4x4xbf16>, vector<32x4xf32> -> vector<32x4xf32>
    %cst_22 = arith.constant 0.000000e+00 : f32
    %52 = vector.shape_cast %48 : vector<32x1xi1> to vector<32x1xi1>
    %53 = vector.broadcast %52 : vector<32x1xi1> to vector<32x4xi1>
    %54 = vector.broadcast %cst_22 : f32 to vector<32x4xf32>
    %55 = arith.select %53, %51, %54 : vector<32x4xi1>, vector<32x4xf32>
    %56 = arith.addf %46, %55 : vector<32x4xf32>
    %57 = vector.broadcast %3 : vector<1x4xf32> to vector<32x4xf32>
    %58 = arith.addf %56, %57 : vector<32x4xf32>
    %cst_23 = arith.constant 0.000000e+00 : f32
    %59 = vector.broadcast %cst_23 : f32 to vector<32x4xf32>
    %60 = arith.maximumf %58, %59 : vector<32x4xf32>
    %61 = arith.truncf %60 : vector<32x4xf32> to vector<32x4xbf16>
    %c0_24 = arith.constant 0 : index
    %c0_25 = arith.constant 0 : index
    %62 = vector.load %arg4[%c0_24, %c0_25] : memref<4x16xbf16, #tpu.memory_space<vmem>>, vector<4x16xbf16>
    %cst_26 = arith.constant dense<0.000000e+00> : vector<32x16xf32>
    %63 = tpu.matmul %61, %62, %cst_26 {dimension_numbers = #tpu.dot_dimension_numbers<[1], [0], [0], [1], [0, 0, 1, 1], [], []>} : vector<32x4xbf16>, vector<4x16xbf16>, vector<32x16xf32> -> vector<32x16xf32>
    %64 = vector.broadcast %4 : vector<1x16xf32> to vector<32x16xf32>
    %65 = arith.addf %63, %64 : vector<32x16xf32>
    %66 = arith.addf %65, %0 : vector<32x16xf32>
    %cst_27 = arith.constant 0.000000e+00 : f32
    %67 = vector.broadcast %cst_27 : f32 to vector<32x16xf32>
    %68 = arith.maximumf %66, %67 : vector<32x16xf32>
    %c0_28 = arith.constant 0 : index
    %c0_29 = arith.constant 0 : index
    %69 = vector.load %arg6[%c0_28, %c0_29] : memref<32x16xf32, #tpu.memory_space<vmem>>, vector<32x16xf32>
    tpu.vector_store %arg6[%c0_28, %c0_29], %68 {strides = array<i32>} : memref<32x16xf32, #tpu.memory_space<vmem>>, vector<32x16xf32>,
    return
  }
  func.func @transform_0(%arg0: i32) -> (i32, i32) {
    %c0_i32 = arith.constant 0 : i32
    %c0_i32_0 = arith.constant 0 : i32
    %c0_i32_1 = arith.constant 0 : i32
    return %c0_i32, %c0_i32_0 : i32, i32
  }
  func.func @transform_1(%arg0: i32) -> (i32, i32) {
    %c0_i32 = arith.constant 0 : i32
    %c0_i32_0 = arith.constant 0 : i32
    %c0_i32_1 = arith.constant 0 : i32
    return %c0_i32, %c0_i32_0 : i32, i32
  }
  func.func @transform_2(%arg0: i32) -> (i32, i32, i32) {
    %c0_i32 = arith.constant 0 : i32
    %c0_i32_0 = arith.constant 0 : i32
    %c0_i32_1 = arith.constant 0 : i32
    %c0_i32_2 = arith.constant 0 : i32
    return %c0_i32, %c0_i32_0, %c0_i32_1 : i32, i32, i32
  }
  func.func @transform_3(%arg0: i32) -> (i32, i32) {
    %c0_i32 = arith.constant 0 : i32
    %c0_i32_0 = arith.constant 0 : i32
    %c0_i32_1 = arith.constant 0 : i32
    return %c0_i32, %c0_i32_0 : i32, i32
  }
  func.func @transform_4(%arg0: i32) -> (i32, i32) {
    %c0_i32 = arith.constant 0 : i32
    %c0_i32_0 = arith.constant 0 : i32
    %c0_i32_1 = arith.constant 0 : i32
    return %c0_i32, %c0_i32_0 : i32, i32
  }
  func.func @transform_5(%arg0: i32) -> (i32, i32) {
    %c0_i32 = arith.constant 0 : i32
    %c0_i32_0 = arith.constant 0 : i32
    %c0_i32_1 = arith.constant 0 : i32
    return %c0_i32, %c0_i32_0 : i32, i32
  }
}

</mosaic_0001>

<llo_original>
// kernel: tpu_custom_call.1
$region0: #{tpu_custom_call.1}
  #allocation0 [shape = 'u32[]', space=smem, size = 0x4, offset = 0x4, fixed_abs, tag = 'smem constant byte address 0x4 - core index']
  #allocation1 [shape = 'u32[144,128]{1,0:T(1,128)}', space=vmem, size = 0x12000, scoped, tag = 'internal scratch']
  %s0 = inlined_call_operand.vmem [shape: f32[32,16], index: 0, kind: input, shape index: {}]
  %s1 = inlined_call_operand.vmem [shape: bf16[16,4], index: 1, kind: input, shape index: {}]
  %s2 = inlined_call_operand.vmem [shape: bf16[3,4,4], index: 2, kind: input, shape index: {}]
  %s3 = inlined_call_operand.vmem [shape: bf16[4,16], index: 3, kind: input, shape index: {}]
  %s4 = inlined_call_operand.vmem [shape: f32[3,16], index: 4, kind: input, shape index: {}]
  %s5 = inlined_call_operand.vmem [shape: f32[32,16], index: 5, kind: output, shape index: {}]
  %s6 = sld [smem:[#allocation0]]
  $region30: #{tpu_custom_call.1} parent=0
    _
  %s8 = ssub.s32 1, %s6
  %s9 = scalar_select 0, %s8, %s6
  // Predicated region
  $region2: #{tpu_custom_call.1} parent=0 // pred_check
    _
  $region3: #{tpu_custom_call.1} parent=0 // pred_check_branch
    %11 = sbr.rel (0) target = $region5
  $region4: #{tpu_custom_call.1} parent=0 // pred_region
    _
  $region5: #{tpu_custom_call.1} parent=0 // pred_fallthru
    _
  // Predicated region
  $region6: #{tpu_custom_call.1} parent=0 // pred_check
    _
  $region7: #{tpu_custom_call.1} parent=0 // pred_check_branch
    %13 = sbr.rel (0) target = $region9
  $region8: #{tpu_custom_call.1} parent=0 // pred_region
    _
  $region9: #{tpu_custom_call.1} parent=0 // pred_fallthru
    _
  // Predicated region
  $region10: #{tpu_custom_call.1} parent=0 // pred_check
    _
  $region11: #{tpu_custom_call.1} parent=0 // pred_check_branch
    %15 = sbr.rel (0) target = $region13
  $region12: #{tpu_custom_call.1} parent=0 // pred_region
    _
  $region13: #{tpu_custom_call.1} parent=0 // pred_fallthru
    _
  // Predicated region
  $region14: #{tpu_custom_call.1} parent=0 // pred_check
    _
  $region15: #{tpu_custom_call.1} parent=0 // pred_check_branch
    %17 = sbr.rel (0) target = $region17
  $region16: #{tpu_custom_call.1} parent=0 // pred_region
    _
  $region17: #{tpu_custom_call.1} parent=0 // pred_fallthru
    _
  // Predicated region
  $region18: #{tpu_custom_call.1} parent=0 // pred_check
    _
  $region19: #{tpu_custom_call.1} parent=0 // pred_check_branch
    %19 = sbr.rel (0) target = $region21
  $region20: #{tpu_custom_call.1} parent=0 // pred_region
    _
  $region21: #{tpu_custom_call.1} parent=0 // pred_fallthru
    _
  %v21 = vld [vmem:[%s0] sm:$0xff]
  %v22 = vld [vmem:[%s0 + $0x8] sm:$0xff]
  %v23 = vld [vmem:[%s0 + $0x10] sm:$0xff]
  %v24 = vld [vmem:[%s0 + $0x18] sm:$0xff]
  %v25 = vld [vmem:[%s4] sm:$0x7]
  %v26 = vpack.c.bf16 %v22, %v21
  %v27 = vpack.c.bf16 %v24, %v23
  %v28 = vld [vmem:[%s1] sm:$0xf]
  %v29 = vld [vmem:[%s1 + $0x4] sm:$0xf]
  %v30 = vlaneseq
  %v31 = vshrl.u32 %v30, 7
  %v32 = vsub.s32 0, %v31
  %v33 = vrot.slane %v25, %v32
  %v36 = vunpack.c.l.b16 %v28
  %v37 = vunpack.c.l.b16 %v29
  %v38 = vpack.c.b16 %v37, %v36
  %vm40 = vcmask 130048
  %v42 = vsel %vm40, %v26, 0
  %v45 = vsel %vm40, %v27, 0
  %47 = vmatprep.subr.bf16.mxu0 0
  %48 = vmatpush1.bf16.msra.mxu0 0
  %49 = vmatprep.subr.bf16.mxu0 0
  %50 = vmatpush1.bf16.msra.mxu0 0
  %51 = vmatprep.subr.bf16.mxu0 0
  %52 = vmatpush1.bf16.msra.mxu0 0
  %53 = vmatprep.subr.bf16.mxu0 0
  %54 = vmatpush1.bf16.msra.mxu0 0
  %55 = vmatprep.subr.bf16.mxu0 0
  %56 = vmatpush1.bf16.msra.mxu0 0
  %57 = vmatprep.subr.bf16.mxu0 0
  %58 = vmatpush1.bf16.msra.mxu0 0
  %59 = vmatprep.subr.bf16.mxu0 0
  %60 = vmatpush1.bf16.msra.mxu0 0
  %61 = vmatprep.subr.bf16.mxu0 0
  %62 = vmatpush1.bf16.msra.mxu0 %v38
  %63 = vmatprep.subr.bf16.mxu0 0
  %64 = vmatpush2.bf16.msra.mxu0 0
  %65 = vmatprep.subr.bf16.mxu0 0
  %66 = vmatpush2.bf16.msra.mxu0 0
  %67 = vmatprep.subr.bf16.mxu0 0
  %68 = vmatpush2.bf16.msra.mxu0 0
  %69 = vmatprep.subr.bf16.mxu0 0
  %70 = vmatpush2.bf16.msra.mxu0 0
  %71 = vmatprep.subr.bf16.mxu0 0
  %72 = vmatpush2.bf16.msra.mxu0 0
  %73 = vmatprep.subr.bf16.mxu0 0
  %74 = vmatpush2.bf16.msra.mxu0 0
  %75 = vmatprep.subr.bf16.mxu0 0
  %76 = vmatpush2.bf16.msra.mxu0 0
  %77 = vmatprep.subr.bf16.mxu0 0
  %78 = vmatpush2.bf16.msra.mxu0 0
  %79 = vmatprep.mubr.bf16.mxu0 0
  %80 = vmatmul.mubr.bf16.gmra.mxu0 %v42
  %v81 = vpop.f32.mrf.mxu0
  %v82 = vadd.f32 %v33, %v81
  %v83 = vpop.f32.mrf.mxu0
  %v84 = vpop.f32.mrf.mxu0
  %v85 = vadd.f32 %v33, %v84
  %v86 = vpop.f32.mrf.mxu0
  %87 = vmatprep.mubr.bf16.mxu0 0
  %88 = vmatmul.mubr.bf16.gmra.mxu0 %v45
  %v89 = vpop.f32.mrf.mxu0
  %v90 = vadd.f32 %v33, %v89
  %v91 = vpop.f32.mrf.mxu0
  %v92 = vpop.f32.mrf.mxu0
  %v93 = vadd.f32 %v33, %v92
  %v94 = vpop.f32.mrf.mxu0
  %95 = vdwg.mxu0
  %v96 = vmax.f32 %v82, 0.0
  %v97 = vmax.f32 %v85, 0.0
  %v98 = vmax.f32 %v90, 0.0
  %v99 = vmax.f32 %v93, 0.0
  %v100 = vlaneseq
  %v101 = vshrl.u32 %v100, 7
  %v102 = vadd.s32 %v101, 8
  %v103 = vadd.s32 %v101, 16
  %v104 = vadd.s32 %v101, 24
  %vm105 = vcmp.lt.s32.totalorder %v101, 0
  %v106 = vsub.s32 0, %v101
  %v107 = vsel %vm105, %v106, %v101
  %v108 = vshrl.u32 %v107, 4
  %v109 = vand.u32 %v107, 15
  %v110 = vsub.s32 0, %v109
  %v111 = vsel %vm105, %v110, %v109
  %vm112 = vcmp.lt.s32.totalorder %v102, 0
  %v113 = vsub.s32 0, %v102
  %v114 = vsel %vm112, %v113, %v102
  %v115 = vshrl.u32 %v114, 4
  %v116 = vand.u32 %v114, 15
  %v117 = vsub.s32 0, %v116
  %v118 = vsel %vm112, %v117, %v116
  %vm119 = vcmp.lt.s32.totalorder %v103, 0
  %v120 = vsub.s32 0, %v103
  %v121 = vsel %vm119, %v120, %v103
  %v122 = vshrl.u32 %v121, 4
  %v123 = vand.u32 %v121, 15
  %v124 = vsub.s32 0, %v123
  %v125 = vsel %vm119, %v124, %v123
  %vm126 = vcmp.lt.s32.totalorder %v104, 0
  %v127 = vsub.s32 0, %v104
  %v128 = vsel %vm126, %v127, %v104
  %v129 = vshrl.u32 %v128, 4
  %v130 = vand.u32 %v128, 15
  %v131 = vsub.s32 0, %v130
  %v132 = vsel %vm126, %v131, %v130
  %vm133 = vcmp.ne.s32.totalorder %v111, 0
  %vm134 = vcmp.ne.s32.totalorder %v118, 0
  %vm135 = vcmp.ne.s32.totalorder %v125, 0
  %vm136 = vcmp.ne.s32.totalorder %v132, 0
  %vm137 = vcmp.lt.s32.totalorder %v111, 0
  %vm138 = vcmp.lt.s32.totalorder %v118, 0
  %vm139 = vcmp.lt.s32.totalorder %v125, 0
  %vm140 = vcmp.lt.s32.totalorder %v132, 0
  %vm141 = vmand %vm137, %vm133
  %vm142 = vmand %vm138, %vm134
  %vm143 = vmand %vm139, %vm135
  %vm144 = vmand %vm140, %vm136
  %v145 = vadd.s32 %v111, 16
  %v146 = vadd.s32 %v118, 16
  %v147 = vadd.s32 %v125, 16
  %v148 = vadd.s32 %v132, 16
  %v149 = vsel %vm141, %v145, %v111
  %v150 = vsel %vm142, %v146, %v118
  %v151 = vsel %vm143, %v147, %v125
  %v152 = vsel %vm144, %v148, %v132
  %v153 = vpack.c.bf16 %v97, %v96
  %v154 = vpack.c.bf16 %v99, %v98
  %v155 = vrot.slane %v96, 7
  %v156 = vrot.slane %v97, 7
  %v157 = vrot.slane %v98, 7
  %v158 = vrot.slane %v99, 7
  %vm159 = vcmp.lt.s32.totalorder %v101, 1
  %v160 = vsel %vm159, %v157, %v158
  %v161 = vsel %vm159, %v156, %v157
  %v162 = vsel %vm159, %v155, %v156
  %v163 = vsel %vm159, %v158, %v155
  %v164 = vpack.c.bf16 %v162, %v163
  %v165 = vpack.c.bf16 %v160, %v161
  %v166 = vrot.slane %v96, 1
  %v167 = vrot.slane %v97, 1
  %v168 = vrot.slane %v98, 1
  %v169 = vrot.slane %v99, 1
  %vm170 = vcmp.lt.s32.totalorder %v101, 7
  %v171 = vsel %vm170, %v168, %v169
  %v172 = vsel %vm170, %v167, %v168
  %v173 = vsel %vm170, %v166, %v167
  %v174 = vsel %vm170, %v169, %v166
  %v175 = vpack.c.bf16 %v172, %v173
  %v176 = vpack.c.bf16 %v174, %v171
  %s177 = scalar_lea.vmem %s2, 2
  %v178 = vld [vmem:[%s177] sm:$0x3]
  %vm179 = vcmp.ge.s32.totalorder %v149, 1
  %vm180 = vcmp.ge.s32.totalorder %v150, 1
  %vm181 = vcmp.ge.s32.totalorder %v151, 1
  %vm182 = vcmp.ge.s32.totalorder %v152, 1
  %v183 = vld [vmem:[%s2] sm:$0x3]
  %vm184 = vcmask 31744
  %v186 = vsel %vm184, %v164, 0
  %v189 = vsel %vm184, %v165, 0
  %vm191 = vcmask 1041408
  %v193 = vsel %vm191, %v183, 0
  %195 = vmatprep.subr.bf16.mxu0 0
  %196 = vmatpush1.bf16.msra.mxu0 0
  %197 = vmatprep.subr.bf16.mxu0 0
  %198 = vmatpush1.bf16.msra.mxu0 0
  %199 = vmatprep.subr.bf16.mxu0 0
  %200 = vmatpush1.bf16.msra.mxu0 0
  %201 = vmatprep.subr.bf16.mxu0 0
  %202 = vmatpush1.bf16.msra.mxu0 0
  %203 = vmatprep.subr.bf16.mxu0 0
  %204 = vmatpush1.bf16.msra.mxu0 0
  %205 = vmatprep.subr.bf16.mxu0 0
  %206 = vmatpush1.bf16.msra.mxu0 0
  %207 = vmatprep.subr.bf16.mxu0 0
  %208 = vmatpush1.bf16.msra.mxu0 0
  %209 = vmatprep.subr.bf16.mxu0 0
  %210 = vmatpush1.bf16.msra.mxu0 %v193
  %211 = vmatprep.subr.bf16.mxu0 0
  %212 = vmatpush2.bf16.msra.mxu0 0
  %213 = vmatprep.subr.bf16.mxu0 0
  %214 = vmatpush2.bf16.msra.mxu0 0
  %215 = vmatprep.subr.bf16.mxu0 0
  %216 = vmatpush2.bf16.msra.mxu0 0
  %217 = vmatprep.subr.bf16.mxu0 0
  %218 = vmatpush2.bf16.msra.mxu0 0
  %219 = vmatprep.subr.bf16.mxu0 0
  %220 = vmatpush2.bf16.msra.mxu0 0
  %221 = vmatprep.subr.bf16.mxu0 0
  %222 = vmatpush2.bf16.msra.mxu0 0
  %223 = vmatprep.subr.bf16.mxu0 0
  %224 = vmatpush2.bf16.msra.mxu0 0
  %225 = vmatprep.subr.bf16.mxu0 0
  %226 = vmatpush2.bf16.msra.mxu0 0
  %227 = vmatprep.mubr.bf16.mxu0 0
  %228 = vmatmul.mubr.bf16.gmra.mxu0 %v186
  %v229 = vpop.f32.mrf.mxu0
  %v230 = vadd.f32 0.0, %v229
  %v231 = vpop.f32.mrf.mxu0
  %v232 = vpop.f32.mrf.mxu0
  %v233 = vadd.f32 0.0, %v232
  %v234 = vpop.f32.mrf.mxu0
  %235 = vmatprep.mubr.bf16.mxu0 0
  %236 = vmatmul.mubr.bf16.gmra.mxu0 %v189
  %v237 = vpop.f32.mrf.mxu0
  %v238 = vadd.f32 0.0, %v237
  %v239 = vpop.f32.mrf.mxu0
  %v240 = vpop.f32.mrf.mxu0
  %v241 = vadd.f32 0.0, %v240
  %v242 = vpop.f32.mrf.mxu0
  %243 = vdwg.mxu0
  %v244 = vsel %vm179, 1, 0
  %v245 = vsel %vm180, 1, 0
  %v246 = vsel %vm181, 1, 0
  %v247 = vsel %vm182, 1, 0
  %vm248 = vcmp.eq.s32.totalorder %v244, 1
  %vm249 = vcmp.eq.s32.totalorder %v245, 1
  %vm250 = vcmp.eq.s32.totalorder %v246, 1
  %vm251 = vcmp.eq.s32.totalorder %v247, 1
  %v252 = vsel %vm248, %v230, 0.0
  %v253 = vsel %vm249, %v233, 0.0
  %v254 = vsel %vm250, %v238, 0.0
  %v255 = vsel %vm251, %v241, 0.0
  %v257 = vsel %vm184, %v153, 0
  %v260 = vsel %vm184, %v154, 0
  %v263 = vsel %vm191, %v178, 0
  %265 = vmatprep.subr.bf16.mxu0 0
  %266 = vmatpush1.bf16.msra.mxu0 0
  %267 = vmatprep.subr.bf16.mxu0 0
  %268 = vmatpush1.bf16.msra.mxu0 0
  %269 = vmatprep.subr.bf16.mxu0 0
  %270 = vmatpush1.bf16.msra.mxu0 0
  %271 = vmatprep.subr.bf16.mxu0 0
  %272 = vmatpush1.bf16.msra.mxu0 0
  %273 = vmatprep.subr.bf16.mxu0 0
  %274 = vmatpush1.bf16.msra.mxu0 0
  %275 = vmatprep.subr.bf16.mxu0 0
  %276 = vmatpush1.bf16.msra.mxu0 0
  %277 = vmatprep.subr.bf16.mxu0 0
  %278 = vmatpush1.bf16.msra.mxu0 0
  %279 = vmatprep.subr.bf16.mxu0 0
  %280 = vmatpush1.bf16.msra.mxu0 %v263
  %281 = vmatprep.subr.bf16.mxu0 0
  %282 = vmatpush2.bf16.msra.mxu0 0
  %283 = vmatprep.subr.bf16.mxu0 0
  %284 = vmatpush2.bf16.msra.mxu0 0
  %285 = vmatprep.subr.bf16.mxu0 0
  %286 = vmatpush2.bf16.msra.mxu0 0
  %287 = vmatprep.subr.bf16.mxu0 0
  %288 = vmatpush2.bf16.msra.mxu0 0
  %289 = vmatprep.subr.bf16.mxu0 0
  %290 = vmatpush2.bf16.msra.mxu0 0
  %291 = vmatprep.subr.bf16.mxu0 0
  %292 = vmatpush2.bf16.msra.mxu0 0
  %293 = vmatprep.subr.bf16.mxu0 0
  %294 = vmatpush2.bf16.msra.mxu0 0
  %295 = vmatprep.subr.bf16.mxu0 0
  %296 = vmatpush2.bf16.msra.mxu0 0
  %297 = vmatprep.mubr.bf16.mxu0 0
  %298 = vmatmul.mubr.bf16.gmra.mxu0 %v257
  %v299 = vpop.f32.mrf.mxu0
  %v300 = vadd.f32 %v252, %v299
  %v301 = vpop.f32.mrf.mxu0
  %v302 = vpop.f32.mrf.mxu0
  %v303 = vadd.f32 %v253, %v302
  %v304 = vpop.f32.mrf.mxu0
  %305 = vmatprep.mubr.bf16.mxu0 0
  %306 = vmatmul.mubr.bf16.gmra.mxu0 %v260
  %v307 = vpop.f32.mrf.mxu0
  %v308 = vadd.f32 %v254, %v307
  %v309 = vpop.f32.mrf.mxu0
  %v310 = vpop.f32.mrf.mxu0
  %v311 = vadd.f32 %v255, %v310
  %v312 = vpop.f32.mrf.mxu0
  %313 = vdwg.mxu0
  %vm314 = vcmp.lt.s32.totalorder %v149, 15
  %vm315 = vcmp.lt.s32.totalorder %v150, 15
  %vm316 = vcmp.lt.s32.totalorder %v151, 15
  %vm317 = vcmp.lt.s32.totalorder %v152, 15
  %s318 = scalar_lea.vmem %s2, 4
  %v319 = vld [vmem:[%s318] sm:$0x3]
  %v321 = vsel %vm184, %v175, 0
  %v324 = vsel %vm184, %v176, 0
  %v327 = vsel %vm191, %v319, 0
  %329 = vmatprep.subr.bf16.mxu0 0
  %330 = vmatpush1.bf16.msra.mxu0 0
  %331 = vmatprep.subr.bf16.mxu0 0
  %332 = vmatpush1.bf16.msra.mxu0 0
  %333 = vmatprep.subr.bf16.mxu0 0
  %334 = vmatpush1.bf16.msra.mxu0 0
  %335 = vmatprep.subr.bf16.mxu0 0
  %336 = vmatpush1.bf16.msra.mxu0 0
  %337 = vmatprep.subr.bf16.mxu0 0
  %338 = vmatpush1.bf16.msra.mxu0 0
  %339 = vmatprep.subr.bf16.mxu0 0
  %340 = vmatpush1.bf16.msra.mxu0 0
  %341 = vmatprep.subr.bf16.mxu0 0
  %342 = vmatpush1.bf16.msra.mxu0 0
  %343 = vmatprep.subr.bf16.mxu0 0
  %344 = vmatpush1.bf16.msra.mxu0 %v327
  %345 = vmatprep.subr.bf16.mxu0 0
  %346 = vmatpush2.bf16.msra.mxu0 0
  %347 = vmatprep.subr.bf16.mxu0 0
  %348 = vmatpush2.bf16.msra.mxu0 0
  %349 = vmatprep.subr.bf16.mxu0 0
  %350 = vmatpush2.bf16.msra.mxu0 0
  %351 = vmatprep.subr.bf16.mxu0 0
  %352 = vmatpush2.bf16.msra.mxu0 0
  %353 = vmatprep.subr.bf16.mxu0 0
  %354 = vmatpush2.bf16.msra.mxu0 0
  %355 = vmatprep.subr.bf16.mxu0 0
  %356 = vmatpush2.bf16.msra.mxu0 0
  %357 = vmatprep.subr.bf16.mxu0 0
  %358 = vmatpush2.bf16.msra.mxu0 0
  %359 = vmatprep.subr.bf16.mxu0 0
  %360 = vmatpush2.bf16.msra.mxu0 0
  %361 = vmatprep.mubr.bf16.mxu0 0
  %362 = vmatmul.mubr.bf16.gmra.mxu0 %v321
  %v363 = vpop.f32.mrf.mxu0
  %v364 = vadd.f32 0.0, %v363
  %v365 = vpop.f32.mrf.mxu0
  %v366 = vpop.f32.mrf.mxu0
  %v367 = vadd.f32 0.0, %v366
  %v368 = vpop.f32.mrf.mxu0
  %369 = vmatprep.mubr.bf16.mxu0 0
  %370 = vmatmul.mubr.bf16.gmra.mxu0 %v324
  %v371 = vpop.f32.mrf.mxu0
  %v372 = vadd.f32 0.0, %v371
  %v373 = vpop.f32.mrf.mxu0
  %v374 = vpop.f32.mrf.mxu0
  %v375 = vadd.f32 0.0, %v374
  %v376 = vpop.f32.mrf.mxu0
  %377 = vdwg.mxu0
  %v378 = vsel %vm314, 1, 0
  %v379 = vsel %vm315, 1, 0
  %v380 = vsel %vm316, 1, 0
  %v381 = vsel %vm317, 1, 0
  %vm382 = vcmp.eq.s32.totalorder %v378, 1
  %vm383 = vcmp.eq.s32.totalorder %v379, 1
  %vm384 = vcmp.eq.s32.totalorder %v380, 1
  %vm385 = vcmp.eq.s32.totalorder %v381, 1
  %v386 = vsel %vm382, %v364, 0.0
  %v387 = vsel %vm383, %v367, 0.0
  %v388 = vsel %vm384, %v372, 0.0
  %v389 = vsel %vm385, %v375, 0.0
  %v390 = vadd.f32 %v300, %v386
  %v391 = vadd.f32 %v303, %v387
  %v392 = vadd.f32 %v308, %v388
  %v393 = vadd.f32 %v311, %v389
  %v394 = vlaneseq
  %v395 = vshrl.u32 %v394, 7
  %v396 = vsub.s32 1, %v395
  %v397 = vrot.slane %v25, %v396
  %v398 = vadd.f32 %v390, %v397
  %v399 = vadd.f32 %v391, %v397
  %v400 = vadd.f32 %v392, %v397
  %v401 = vadd.f32 %v393, %v397
  %v402 = vmax.f32 %v398, 0.0
  %v403 = vmax.f32 %v399, 0.0
  %v404 = vmax.f32 %v400, 0.0
  %v405 = vmax.f32 %v401, 0.0
  %v406 = vpack.c.bf16 %v403, %v402
  %v407 = vpack.c.bf16 %v405, %v404
  %v408 = vld [vmem:[%s3] sm:$0x3]
  %v409 = vlaneseq
  %v410 = vshrl.u32 %v409, 7
  %v411 = vsub.s32 2, %v410
  %v412 = vrot.slane %v25, %v411
  %v414 = vsel %vm184, %v406, 0
  %v417 = vsel %vm184, %v407, 0
  %v420 = vsel %vm191, %v408, 0
  %422 = vmatprep.subr.bf16.mxu0 0
  %423 = vmatpush1.bf16.msra.mxu0 0
  %424 = vmatprep.subr.bf16.mxu0 0
  %425 = vmatpush1.bf16.msra.mxu0 0
  %426 = vmatprep.subr.bf16.mxu0 0
  %427 = vmatpush1.bf16.msra.mxu0 0
  %428 = vmatprep.subr.bf16.mxu0 0
  %429 = vmatpush1.bf16.msra.mxu0 0
  %430 = vmatprep.subr.bf16.mxu0 0
  %431 = vmatpush1.bf16.msra.mxu0 0
  %432 = vmatprep.subr.bf16.mxu0 0
  %433 = vmatpush1.bf16.msra.mxu0 0
  %434 = vmatprep.subr.bf16.mxu0 0
  %435 = vmatpush1.bf16.msra.mxu0 0
  %436 = vmatprep.subr.bf16.mxu0 0
  %437 = vmatpush1.bf16.msra.mxu0 %v420
  %438 = vmatprep.subr.bf16.mxu0 0
  %439 = vmatpush2.bf16.msra.mxu0 0
  %440 = vmatprep.subr.bf16.mxu0 0
  %441 = vmatpush2.bf16.msra.mxu0 0
  %442 = vmatprep.subr.bf16.mxu0 0
  %443 = vmatpush2.bf16.msra.mxu0 0
  %444 = vmatprep.subr.bf16.mxu0 0
  %445 = vmatpush2.bf16.msra.mxu0 0
  %446 = vmatprep.subr.bf16.mxu0 0
  %447 = vmatpush2.bf16.msra.mxu0 0
  %448 = vmatprep.subr.bf16.mxu0 0
  %449 = vmatpush2.bf16.msra.mxu0 0
  %450 = vmatprep.subr.bf16.mxu0 0
  %451 = vmatpush2.bf16.msra.mxu0 0
  %452 = vmatprep.subr.bf16.mxu0 0
  %453 = vmatpush2.bf16.msra.mxu0 0
  %454 = vmatprep.mubr.bf16.mxu0 0
  %455 = vmatmul.mubr.bf16.gmra.mxu0 %v414
  %v456 = vpop.f32.mrf.mxu0
  %v457 = vadd.f32 %v412, %v456
  %v458 = vpop.f32.mrf.mxu0
  %v459 = vpop.f32.mrf.mxu0
  %v460 = vadd.f32 %v412, %v459
  %v461 = vpop.f32.mrf.mxu0
  %462 = vmatprep.mubr.bf16.mxu0 0
  %463 = vmatmul.mubr.bf16.gmra.mxu0 %v417
  %v464 = vpop.f32.mrf.mxu0
  %v465 = vadd.f32 %v412, %v464
  %v466 = vpop.f32.mrf.mxu0
  %v467 = vpop.f32.mrf.mxu0
  %v468 = vadd.f32 %v412, %v467
  %v469 = vpop.f32.mrf.mxu0
  %470 = vdwg.mxu0
  %v471 = vadd.f32 %v457, %v21
  %v472 = vadd.f32 %v460, %v22
  %v473 = vadd.f32 %v465, %v23
  %v474 = vadd.f32 %v468, %v24
  %v475 = vmax.f32 %v471, 0.0
  %v476 = vmax.f32 %v472, 0.0
  %v477 = vmax.f32 %v473, 0.0
  %v478 = vmax.f32 %v474, 0.0
  %479 = vst.msk [vmem:[%s5] sm:$0xff] %vm40, %v475
  %480 = vst.msk [vmem:[%s5 + $0x8] sm:$0xff] %vm40, %v476
  %481 = vst.msk [vmem:[%s5 + $0x10] sm:$0xff] %vm40, %v477
  %482 = vst.msk [vmem:[%s5 + $0x18] sm:$0xff] %vm40, %v478
  // Predicated region
  $region22: #{tpu_custom_call.1} parent=0 // pred_check
    _
  $region23: #{tpu_custom_call.1} parent=0 // pred_check_branch
    %484 = sbr.rel (0) target = $region25
  $region24: #{tpu_custom_call.1} parent=0 // pred_region
    _
  $region25: #{tpu_custom_call.1} parent=0 // pred_fallthru
    _
  // Predicated region
  $region26: #{tpu_custom_call.1} parent=0 // pred_check
    _
  $region27: #{tpu_custom_call.1} parent=0 // pred_check_branch
    %486 = sbr.rel (0) target = $region29
  $region28: #{tpu_custom_call.1} parent=0 // pred_region
    _
  $region29: #{tpu_custom_call.1} parent=0 // pred_fallthru
    _

</llo_original>
